<compile_context>
chip_gen: v6e
topology: v6e:2x2x1
jax: 0.10.0
libtpu: 0.0.40
codegen_flags: <defaults>
</compile_context>

<pallas_src>
import functools

import jax
import jax.numpy as jnp
from jax.experimental import pallas as pl
from jax.experimental.pallas import tpu as pltpu

CIN = 4                  # input channels
VER_DIM = 8              # vertex channels (4 keypoints x 2)
HEAD_OUT = VER_DIM + 2   # vertex channels + mask + amodal_mask
ACC_ROWS = 8             # [sl1_sum, w_sum, bce_mask, bce_amodal, 0, 0, 0, 0]
TILE_HW_MAX = 16384      # pixels (lanes) per grid step; multiple of 128


# ---------------------------------------------------------------------------
# Kernels
# ---------------------------------------------------------------------------
def _head(x_ref, w_ref, b_ref):
    # x_ref: (CIN, T), w_ref: (HEAD_OUT, CIN), b_ref: (HEAD_OUT, 1)
    z = jnp.dot(w_ref[...], x_ref[...], preferred_element_type=jnp.float32)
    return z + b_ref[...]                      # (HEAD_OUT, T)


def _head_kernel(x_ref, w_ref, b_ref, yv_ref, ym_ref, ya_ref):
    z = _head(x_ref, w_ref, b_ref)
    yv_ref[...] = z[:VER_DIM, :]
    ym_ref[...] = jax.nn.sigmoid(z[VER_DIM:VER_DIM + 1, :])
    ya_ref[...] = jax.nn.sigmoid(z[VER_DIM + 1:, :])


def _fused_kernel(x_ref, w_ref, b_ref, gv_ref, gm_ref, ga_ref,
                  yv_ref, ym_ref, ya_ref, acc_ref, *, hw):
    j = pl.program_id(1)

    @pl.when(j == 0)
    def _init():
        acc_ref[...] = jnp.zeros_like(acc_ref)

    # ---- head --------------------------------------------------------------
    z = _head(x_ref, w_ref, b_ref)
    zv = z[:VER_DIM, :]                        # (8, T) vertex (linear)
    zl_m = z[VER_DIM:VER_DIM + 1, :]           # (1, T) mask logit
    zl_a = z[VER_DIM + 1:, :]                  # (1, T) amodal logit

    yv_ref[...] = zv
    ym_ref[...] = jax.nn.sigmoid(zl_m)
    ya_ref[...] = jax.nn.sigmoid(zl_a)

    # ---- loss partial sums (mask ragged tail with an in-kernel iota) --------
    t = gm_ref.shape[-1]
    lane = jax.lax.broadcasted_iota(jnp.int32, (1, t), 1)
    valid = (j * t + lane) < hw                # (1, T) bool; all-true unless ragged

    gm = jnp.where(valid, gm_ref[...], 0.0)    # mask weight / BCE target
    ga = jnp.where(valid, ga_ref[...], 0.0)

    # smooth L1 (beta = 1) on the mask-weighted difference
    d = jnp.where(valid, (zv - gv_ref[...]) * gm, 0.0)
    ad = jnp.abs(d)
    sl1 = jnp.where(ad < 1.0, 0.5 * d * d, ad - 0.5)

    # BCE with logits: max(z,0) - z*t + log(1 + exp(-|z|)) (numerically stable)
    def bce_logits(zl, tgt):
        v = jnp.maximum(zl, 0.0) - zl * tgt + jnp.log(1.0 + jnp.exp(-jnp.abs(zl)))
        return jnp.where(valid, v, 0.0)

    acc_ref[0:1, :] += jnp.sum(sl1, axis=0, keepdims=True)
    acc_ref[1:2, :] += gm
    acc_ref[2:3, :] += bce_logits(zl_m, gm)
    acc_ref[3:4, :] += bce_logits(zl_a, ga)


# ---------------------------------------------------------------------------
# pallas_call wrappers
# ---------------------------------------------------------------------------
def _choose_tile(hw):
    if hw <= TILE_HW_MAX:
        return hw, 1                           # block == full dim (always legal)
    return TILE_HW_MAX, pl.cdiv(hw, TILE_HW_MAX)


def head_only(x, w, b):
    B, _, hw = x.shape
    tile, n_tiles = _choose_tile(hw)
    row = lambda bi, j: (bi, 0, j)
    const = lambda bi, j: (0, 0)
    return pl.pallas_call(
        _head_kernel,
        out_shape=(
            jax.ShapeDtypeStruct((B, VER_DIM, hw), jnp.float32),
            jax.ShapeDtypeStruct((B, 1, hw), jnp.float32),
            jax.ShapeDtypeStruct((B, 1, hw), jnp.float32),
        ),
        grid_spec=pltpu.PrefetchScalarGridSpec(
            num_scalar_prefetch=0,
            grid=(B, n_tiles),
            in_specs=[
                pl.BlockSpec((None, CIN, tile), row),
                pl.BlockSpec((HEAD_OUT, CIN), const),
                pl.BlockSpec((HEAD_OUT, 1), const),
            ],
            out_specs=(
                pl.BlockSpec((None, VER_DIM, tile), row),
                pl.BlockSpec((None, 1, tile), row),
                pl.BlockSpec((None, 1, tile), row),
            ),
        ),
        compiler_params=pltpu.CompilerParams(
            dimension_semantics=("parallel", "parallel")),
    )(x, w, b)


def fused_head_loss(x, w, b, gv, gm, ga):
    B, _, hw = x.shape
    tile, n_tiles = _choose_tile(hw)
    row = lambda bi, j: (bi, 0, j)
    const = lambda bi, j: (0, 0)
    acc_map = lambda bi, j: (bi, 0, 0)         # per-batch accumulator, VMEM-resident over j
    kernel = functools.partial(_fused_kernel, hw=hw)
    return pl.pallas_call(
        kernel,
        out_shape=(
            jax.ShapeDtypeStruct((B, VER_DIM, hw), jnp.float32),
            jax.ShapeDtypeStruct((B, 1, hw), jnp.float32),
            jax.ShapeDtypeStruct((B, 1, hw), jnp.float32),
            jax.ShapeDtypeStruct((B, ACC_ROWS, tile), jnp.float32),
        ),
        grid_spec=pltpu.PrefetchScalarGridSpec(
            num_scalar_prefetch=0,
            grid=(B, n_tiles),
            in_specs=[
                pl.BlockSpec((None, CIN, tile), row),
                pl.BlockSpec((HEAD_OUT, CIN), const),
                pl.BlockSpec((HEAD_OUT, 1), const),
                pl.BlockSpec((None, VER_DIM, tile), row),
                pl.BlockSpec((None, 1, tile), row),
                pl.BlockSpec((None, 1, tile), row),
            ],
            out_specs=(
                pl.BlockSpec((None, VER_DIM, tile), row),
                pl.BlockSpec((None, 1, tile), row),
                pl.BlockSpec((None, 1, tile), row),
                pl.BlockSpec((None, ACC_ROWS, tile), acc_map),
            ),
        ),
        compiler_params=pltpu.CompilerParams(
            dimension_semantics=("parallel", "arbitrary")),
    )(x, w, b, gv, gm, ga)


# ---------------------------------------------------------------------------
# NetworkWrapper equivalent
# ---------------------------------------------------------------------------
class NetworkWrapperPallas:
    # TODO(synk): the wrapped `net` is an arbitrary user module in PyTorch; here it
    # is a synthetic 1x1-conv head (channel mix + bias) producing vertex/mask/amodal.
    def __init__(self, key):
        kw, kb = jax.random.split(key)
        self.w = 0.1 * jax.random.normal(kw, (HEAD_OUT, CIN), jnp.float32)
        self.b = 0.01 * jax.random.normal(kb, (HEAD_OUT, 1), jnp.float32)

    def __call__(self, batch):
        inp = batch['inp']                      # (B, CIN, H, W) - native NCHW
        B, C, H, W = inp.shape
        hw = H * W
        x = inp.reshape(B, C, hw)               # free reshape, stays channel-major

        if 'pose_test' in batch['meta']:
            yv, ym, ya = head_only(x, self.w, self.b)
            output = {
                'vertex': yv.reshape(B, VER_DIM, H, W),
                'mask': ym.reshape(B, H, W),
                'amodal_mask': ya.reshape(B, H, W),
            }
            return output, jnp.asarray(0, jnp.int32), {}, {}

        gv = batch['vertex'].reshape(B, VER_DIM, hw)
        gm = batch['mask'].astype(jnp.float32).reshape(B, 1, hw)
        ga = batch['amodal_mask'].astype(jnp.float32).reshape(B, 1, hw)

        yv, ym, ya, acc = fused_head_loss(x, self.w, self.b, gv, gm, ga)

        output = {
            'vertex': yv.reshape(B, VER_DIM, H, W),
            'mask': ym.reshape(B, H, W),
            'amodal_mask': ya.reshape(B, H, W),
        }

        sums = jnp.sum(acc, axis=(0, 2))        # (ACC_ROWS,) tiny final reduce
        vd = batch['vertex'].shape[1]
        n_px = B * hw
        # NOTE: matches the PyTorch reference exactly -- no eps guard on the
        # mask-weight sum (an all-background batch yields inf/nan there too).
        vote_loss = sums[0] / sums[1] / vd
        mask_loss = sums[2] / n_px
        amodal_mask_loss = sums[3] / n_px
        loss = vote_loss + mask_loss + amodal_mask_loss

        scalar_stats = {
            'vote_loss': vote_loss,
            'mask_loss': mask_loss,
            'amodal_mask_loss': amodal_mask_loss,
            'loss': loss,
        }
        return output, loss, scalar_stats, {}


# ---------------------------------------------------------------------------
if __name__ == "__main__":
    key = jax.random.PRNGKey(0)
    k_inp, k_vtx, k_m, k_am, k_params = jax.random.split(key, 5)

    B, H, W = 2, 16, 16
    batch = {
        'inp': jax.random.normal(k_inp, (B, CIN, H, W), jnp.float32),
        'vertex': jax.random.normal(k_vtx, (B, VER_DIM, H, W), jnp.float32),
        'mask': jax.random.bernoulli(k_m, 0.5, (B, H, W)).astype(jnp.float32),
        'amodal_mask': jax.random.bernoulli(k_am, 0.6, (B, H, W)).astype(jnp.float32),
        'meta': {},
    }

    wrapper = NetworkWrapperPallas(k_params)
    output, loss, scalar_stats, image_stats = wrapper(batch)
    jax.block_until_ready(loss)

    # --- pure-JAX reference check of the head + loss math ---
    x = batch['inp'].reshape(B, CIN, H * W)
    z_ref = jnp.einsum('oc,bcp->bop', wrapper.w, x) + wrapper.b[None]
    v_ref = z_ref[:, :VER_DIM].reshape(B, VER_DIM, H, W)
    m_ref = jax.nn.sigmoid(z_ref[:, VER_DIM]).reshape(B, H, W)
    a_ref = jax.nn.sigmoid(z_ref[:, VER_DIM + 1]).reshape(B, H, W)

    wgt = batch['mask'][:, None]
    d = v_ref * wgt - batch['vertex'] * wgt
    sl1 = jnp.where(jnp.abs(d) < 1.0, 0.5 * d * d, jnp.abs(d) - 0.5)
    vote_ref = jnp.sum(sl1) / jnp.sum(wgt) / VER_DIM
    bce = lambda p, t: jnp.mean(-(t * jnp.log(p) + (1 - t) * jnp.log(1 - p)))
    loss_ref = vote_ref + bce(m_ref, batch['mask']) + bce(a_ref, batch['amodal_mask'])

    assert jnp.allclose(loss, loss_ref, rtol=1e-3, atol=1e-4), (loss, loss_ref)
    assert jnp.allclose(output['vertex'], v_ref, atol=1e-3)
    assert jnp.allclose(output['mask'], m_ref, atol=1e-3)
    assert jnp.allclose(output['amodal_mask'], a_ref, atol=1e-3)

    # pose_test branch (head-only kernel, no loss work)
    out2, loss2, s2, i2 = wrapper({**batch, 'meta': {'pose_test': True}})
    jax.block_until_ready(loss2)
    assert loss2 == 0 and s2 == {} and i2 == {}
    assert jnp.allclose(out2['mask'], m_ref, atol=1e-3)

    print("KERNEL_OK")
</pallas_src>

<mosaic_0001>
module attributes {stable_mosaic.version = 11 : i64} {
  func.func @_fused_kernel(%arg0: i32, %arg1: i32, %arg2: memref<1x4x256xf32, #tpu.memory_space<vmem>>, %arg3: memref<10x4xf32, #tpu.memory_space<vmem>>, %arg4: memref<10x1xf32, #tpu.memory_space<vmem>>, %arg5: memref<1x8x256xf32, #tpu.memory_space<vmem>>, %arg6: memref<1x1x256xf32, #tpu.memory_space<vmem>>, %arg7: memref<1x1x256xf32, #tpu.memory_space<vmem>>, %arg8: memref<1x8x256xf32, #tpu.memory_space<vmem>>, %arg9: memref<1x1x256xf32, #tpu.memory_space<vmem>>, %arg10: memref<1x1x256xf32, #tpu.memory_space<vmem>>, %arg11: memref<1x8x256xf32, #tpu.memory_space<vmem>>) attributes {dimension_semantics = [#tpu.dimension_semantics<parallel>, #tpu.dimension_semantics<arbitrary>], iteration_bounds = array<i64: 2, 1>, scalar_prefetch = 0 : i64, scratch_operands = 0 : i64, tpu.core_type = #tpu.core_type<tc>, window_params = [{transform_indices = @transform_0, window_bounds = array<i64: 1, 4, 256>}, {pipeline_mode = #tpu.pipeline_mode<synchronous>, transform_indices = @transform_1, window_bounds = array<i64: 10, 4>}, {pipeline_mode = #tpu.pipeline_mode<synchronous>, transform_indices = @transform_2, window_bounds = array<i64: 10, 1>}, {transform_indices = @transform_3, window_bounds = array<i64: 1, 8, 256>}, {transform_indices = @transform_4, window_bounds = array<i64: 1, 1, 256>}, {transform_indices = @transform_5, window_bounds = array<i64: 1, 1, 256>}, {transform_indices = @transform_6, window_bounds = array<i64: 1, 8, 256>}, {transform_indices = @transform_7, window_bounds = array<i64: 1, 1, 256>}, {transform_indices = @transform_8, window_bounds = array<i64: 1, 1, 256>}, {transform_indices = @transform_9, window_bounds = array<i64: 1, 8, 256>}]} {
    %c0_i32 = arith.constant 0 : i32
    %0 = arith.cmpi eq, %arg1, %c0_i32 : i32
    %1 = arith.extui %0 : i1 to i32
    %c0_i32_0 = arith.constant 0 : i32
    %2 = arith.cmpi ne, %1, %c0_i32_0 : i32
    scf.if %2 {
      %cst_64 = arith.constant 0.000000e+00 : f32
      %118 = vector.broadcast %cst_64 : f32 to vector<8x256xf32>
      %c0_65 = arith.constant 0 : index
      %c0_66 = arith.constant 0 : index
      %c0_67 = arith.constant 0 : index
      %119 = vector.load %arg11[%c0_65, %c0_66, %c0_67] : memref<1x8x256xf32, #tpu.memory_space<vmem>>, vector<1x8x256xf32>
      %120 = vector.shape_cast %119 : vector<1x8x256xf32> to vector<8x256xf32>
      %121 = vector.shape_cast %118 : vector<8x256xf32> to vector<1x8x256xf32>
      tpu.vector_store %arg11[%c0_65, %c0_66, %c0_67], %121 {strides = array<i32>} : memref<1x8x256xf32, #tpu.memory_space<vmem>>, vector<1x8x256xf32>,
    } else {
    }
    %c0 = arith.constant 0 : index
    %c0_1 = arith.constant 0 : index
    %3 = vector.load %arg3[%c0, %c0_1] : memref<10x4xf32, #tpu.memory_space<vmem>>, vector<10x4xf32>
    %c0_2 = arith.constant 0 : index
    %c0_3 = arith.constant 0 : index
    %c0_4 = arith.constant 0 : index
    %4 = vector.load %arg2[%c0_2, %c0_3, %c0_4] : memref<1x4x256xf32, #tpu.memory_space<vmem>>, vector<1x4x256xf32>
    %5 = vector.shape_cast %4 : vector<1x4x256xf32> to vector<4x256xf32>
    %cst = arith.constant dense<0.000000e+00> : vector<10x256xf32>
    %6 = tpu.matmul %3, %5, %cst {dimension_numbers = #tpu.dot_dimension_numbers<[1], [0], [0], [1], [0, 0, 1, 1], [], []>} : vector<10x4xf32>, vector<4x256xf32>, vector<10x256xf32> -> vector<10x256xf32>
    %c0_5 = arith.constant 0 : index
    %c0_6 = arith.constant 0 : index
    %7 = vector.load %arg4[%c0_5, %c0_6] : memref<10x1xf32, #tpu.memory_space<vmem>>, vector<10x1xf32>
    %8 = vector.broadcast %7 : vector<10x1xf32> to vector<10x256xf32>
    %9 = arith.addf %6, %8 : vector<10x256xf32>
    %10 = vector.extract_strided_slice %9 {offsets = [0, 0], sizes = [8, 256], strides = [1, 1]} : vector<10x256xf32> to vector<8x256xf32>
    %11 = vector.extract_strided_slice %9 {offsets = [8, 0], sizes = [1, 256], strides = [1, 1]} : vector<10x256xf32> to vector<1x256xf32>
    %12 = vector.extract_strided_slice %9 {offsets = [9, 0], sizes = [1, 256], strides = [1, 1]} : vector<10x256xf32> to vector<1x256xf32>
    %c0_7 = arith.constant 0 : index
    %c0_8 = arith.constant 0 : index
    %c0_9 = arith.constant 0 : index
    %13 = vector.load %arg8[%c0_7, %c0_8, %c0_9] : memref<1x8x256xf32, #tpu.memory_space<vmem>>, vector<1x8x256xf32>
    %14 = vector.shape_cast %13 : vector<1x8x256xf32> to vector<8x256xf32>
    %15 = vector.shape_cast %10 : vector<8x256xf32> to vector<1x8x256xf32>
    tpu.vector_store %arg8[%c0_7, %c0_8, %c0_9], %15 {strides = array<i32>} : memref<1x8x256xf32, #tpu.memory_space<vmem>>, vector<1x8x256xf32>,
    %16 = arith.negf %11 : vector<1x256xf32>
    %17 = math.exp %16 : vector<1x256xf32>
    %cst_10 = arith.constant 1.000000e+00 : f32
    %18 = vector.broadcast %cst_10 : f32 to vector<1x256xf32>
    %19 = arith.addf %18, %17 : vector<1x256xf32>
    %20 = arith.divf %18, %19 : vector<1x256xf32>
    %c0_11 = arith.constant 0 : index
    %c0_12 = arith.constant 0 : index
    %c0_13 = arith.constant 0 : index
    %21 = vector.load %arg9[%c0_11, %c0_12, %c0_13] : memref<1x1x256xf32, #tpu.memory_space<vmem>>, vector<1x1x256xf32>
    %22 = vector.shape_cast %21 : vector<1x1x256xf32> to vector<1x256xf32>
    %23 = vector.shape_cast %20 : vector<1x256xf32> to vector<1x1x256xf32>
    tpu.vector_store %arg9[%c0_11, %c0_12, %c0_13], %23 {strides = array<i32>} : memref<1x1x256xf32, #tpu.memory_space<vmem>>, vector<1x1x256xf32>,
    %24 = arith.negf %12 : vector<1x256xf32>
    %25 = math.exp %24 : vector<1x256xf32>
    %cst_14 = arith.constant 1.000000e+00 : f32
    %26 = vector.broadcast %cst_14 : f32 to vector<1x256xf32>
    %27 = arith.addf %26, %25 : vector<1x256xf32>
    %28 = arith.divf %26, %27 : vector<1x256xf32>
    %c0_15 = arith.constant 0 : index
    %c0_16 = arith.constant 0 : index
    %c0_17 = arith.constant 0 : index
    %29 = vector.load %arg10[%c0_15, %c0_16, %c0_17] : memref<1x1x256xf32, #tpu.memory_space<vmem>>, vector<1x1x256xf32>
    %30 = vector.shape_cast %29 : vector<1x1x256xf32> to vector<1x256xf32>
    %31 = vector.shape_cast %28 : vector<1x256xf32> to vector<1x1x256xf32>
    tpu.vector_store %arg10[%c0_15, %c0_16, %c0_17], %31 {strides = array<i32>} : memref<1x1x256xf32, #tpu.memory_space<vmem>>, vector<1x1x256xf32>,
    %32 = tpu.iota {dimensions = array<i32: 1>} : vector<1x256xi32>
    %c256_i32 = arith.constant 256 : i32
    %33 = arith.muli %arg1, %c256_i32 : i32
    %34 = vector.broadcast %33 : i32 to vector<1x256xi32>
    %35 = arith.addi %34, %32 : vector<1x256xi32>
    %c256_i32_18 = arith.constant 256 : i32
    %36 = vector.broadcast %c256_i32_18 : i32 to vector<1x256xi32>
    %37 = arith.cmpi slt, %35, %36 : vector<1x256xi32>
    %c0_19 = arith.constant 0 : index
    %c0_20 = arith.constant 0 : index
    %c0_21 = arith.constant 0 : index
    %38 = vector.load %arg6[%c0_19, %c0_20, %c0_21] : memref<1x1x256xf32, #tpu.memory_space<vmem>>, vector<1x1x256xf32>
    %39 = vector.shape_cast %38 : vector<1x1x256xf32> to vector<1x256xf32>
    %cst_22 = arith.constant 0.000000e+00 : f32
    %40 = vector.broadcast %cst_22 : f32 to vector<1x256xf32>
    %41 = arith.select %37, %39, %40 : vector<1x256xi1>, vector<1x256xf32>
    %c0_23 = arith.constant 0 : index
    %c0_24 = arith.constant 0 : index
    %c0_25 = arith.constant 0 : index
    %42 = vector.load %arg7[%c0_23, %c0_24, %c0_25] : memref<1x1x256xf32, #tpu.memory_space<vmem>>, vector<1x1x256xf32>
    %43 = vector.shape_cast %42 : vector<1x1x256xf32> to vector<1x256xf32>
    %cst_26 = arith.constant 0.000000e+00 : f32
    %44 = vector.broadcast %cst_26 : f32 to vector<1x256xf32>
    %45 = arith.select %37, %43, %44 : vector<1x256xi1>, vector<1x256xf32>
    %c0_27 = arith.constant 0 : index
    %c0_28 = arith.constant 0 : index
    %c0_29 = arith.constant 0 : index
    %46 = vector.load %arg5[%c0_27, %c0_28, %c0_29] : memref<1x8x256xf32, #tpu.memory_space<vmem>>, vector<1x8x256xf32>
    %47 = vector.shape_cast %46 : vector<1x8x256xf32> to vector<8x256xf32>
    %48 = arith.subf %10, %47 : vector<8x256xf32>
    %49 = vector.broadcast %41 : vector<1x256xf32> to vector<8x256xf32>
    %50 = arith.mulf %48, %49 : vector<8x256xf32>
    %cst_30 = arith.constant 0.000000e+00 : f32
    %51 = vector.shape_cast %37 : vector<1x256xi1> to vector<1x256xi1>
    %52 = vector.broadcast %51 : vector<1x256xi1> to vector<8x256xi1>
    %53 = vector.broadcast %cst_30 : f32 to vector<8x256xf32>
    %54 = arith.select %52, %50, %53 : vector<8x256xi1>, vector<8x256xf32>
    %55 = math.absf %54 : vector<8x256xf32>
    %cst_31 = arith.constant 1.000000e+00 : f32
    %56 = vector.broadcast %cst_31 : f32 to vector<8x256xf32>
    %57 = arith.cmpf olt, %55, %56 : vector<8x256xf32>
    %cst_32 = arith.constant 5.000000e-01 : f32
    %58 = vector.broadcast %cst_32 : f32 to vector<8x256xf32>
    %59 = arith.mulf %58, %54 : vector<8x256xf32>
    %60 = arith.mulf %59, %54 : vector<8x256xf32>
    %cst_33 = arith.constant 5.000000e-01 : f32
    %61 = vector.broadcast %cst_33 : f32 to vector<8x256xf32>
    %62 = arith.subf %55, %61 : vector<8x256xf32>
    %63 = arith.select %57, %60, %62 : vector<8x256xi1>, vector<8x256xf32>
    %c0_34 = arith.constant 0 : index
    %c0_35 = arith.constant 0 : index
    %c0_36 = arith.constant 0 : index
    %64 = vector.load %arg11[%c0_34, %c0_35, %c0_36] : memref<1x8x256xf32, #tpu.memory_space<vmem>>, vector<1x1x256xf32>
    %65 = vector.shape_cast %64 : vector<1x1x256xf32> to vector<1x256xf32>
    %cst_37 = arith.constant dense<0.000000e+00> : vector<256xf32>
    %66 = vector.multi_reduction <add>, %63, %cst_37 [0] : vector<8x256xf32> to vector<256xf32>
    %67 = vector.shape_cast %66 : vector<256xf32> to vector<1x256xf32>
    %68 = arith.addf %65, %67 : vector<1x256xf32>
    %c0_38 = arith.constant 0 : index
    %c0_39 = arith.constant 0 : index
    %c0_40 = arith.constant 0 : index
    %69 = vector.load %arg11[%c0_38, %c0_39, %c0_40] : memref<1x8x256xf32, #tpu.memory_space<vmem>>, vector<1x1x256xf32>
    %70 = vector.shape_cast %69 : vector<1x1x256xf32> to vector<1x256xf32>
    %71 = vector.shape_cast %68 : vector<1x256xf32> to vector<1x1x256xf32>
    tpu.vector_store %arg11[%c0_38, %c0_39, %c0_40], %71 {strides = array<i32>} : memref<1x8x256xf32, #tpu.memory_space<vmem>>, vector<1x1x256xf32>,
    %c0_41 = arith.constant 0 : index
    %c1 = arith.constant 1 : index
    %c0_42 = arith.constant 0 : index
    %72 = vector.load %arg11[%c0_41, %c1, %c0_42] : memref<1x8x256xf32, #tpu.memory_space<vmem>>, vector<1x1x256xf32>
    %73 = vector.shape_cast %72 : vector<1x1x256xf32> to vector<1x256xf32>
    %74 = arith.addf %73, %41 : vector<1x256xf32>
    %c0_43 = arith.constant 0 : index
    %c1_44 = arith.constant 1 : index
    %c0_45 = arith.constant 0 : index
    %75 = vector.load %arg11[%c0_43, %c1_44, %c0_45] : memref<1x8x256xf32, #tpu.memory_space<vmem>>, vector<1x1x256xf32>
    %76 = vector.shape_cast %75 : vector<1x1x256xf32> to vector<1x256xf32>
    %77 = vector.shape_cast %74 : vector<1x256xf32> to vector<1x1x256xf32>
    tpu.vector_store %arg11[%c0_43, %c1_44, %c0_45], %77 {strides = array<i32>} : memref<1x8x256xf32, #tpu.memory_space<vmem>>, vector<1x1x256xf32>,
    %c0_46 = arith.constant 0 : index
    %c2 = arith.constant 2 : index
    %c0_47 = arith.constant 0 : index
    %78 = vector.load %arg11[%c0_46, %c2, %c0_47] : memref<1x8x256xf32, #tpu.memory_space<vmem>>, vector<1x1x256xf32>
    %79 = vector.shape_cast %78 : vector<1x1x256xf32> to vector<1x256xf32>
    %cst_48 = arith.constant 0.000000e+00 : f32
    %80 = vector.broadcast %cst_48 : f32 to vector<1x256xf32>
    %81 = arith.maximumf %11, %80 : vector<1x256xf32>
    %82 = arith.mulf %11, %41 : vector<1x256xf32>
    %83 = arith.subf %81, %82 : vector<1x256xf32>
    %84 = math.absf %11 : vector<1x256xf32>
    %cst_49 = arith.constant 0.000000e+00 : f32
    %85 = vector.broadcast %cst_49 : f32 to vector<1x256xf32>
    %86 = arith.subf %85, %84 : vector<1x256xf32>
    %87 = math.exp %86 : vector<1x256xf32>
    %cst_50 = arith.constant 1.000000e+00 : f32
    %88 = vector.broadcast %cst_50 : f32 to vector<1x256xf32>
    %89 = arith.addf %88, %87 : vector<1x256xf32>
    %90 = math.log %89 : vector<1x256xf32>
    %91 = arith.addf %83, %90 : vector<1x256xf32>
    %cst_51 = arith.constant 0.000000e+00 : f32
    %92 = vector.broadcast %cst_51 : f32 to vector<1x256xf32>
    %93 = arith.select %37, %91, %92 : vector<1x256xi1>, vector<1x256xf32>
    %94 = arith.addf %79, %93 : vector<1x256xf32>
    %c0_52 = arith.constant 0 : index
    %c2_53 = arith.constant 2 : index
    %c0_54 = arith.constant 0 : index
    %95 = vector.load %arg11[%c0_52, %c2_53, %c0_54] : memref<1x8x256xf32, #tpu.memory_space<vmem>>, vector<1x1x256xf32>
    %96 = vector.shape_cast %95 : vector<1x1x256xf32> to vector<1x256xf32>
    %97 = vector.shape_cast %94 : vector<1x256xf32> to vector<1x1x256xf32>
    tpu.vector_store %arg11[%c0_52, %c2_53, %c0_54], %97 {strides = array<i32>} : memref<1x8x256xf32, #tpu.memory_space<vmem>>, vector<1x1x256xf32>,
    %c0_55 = arith.constant 0 : index
    %c3 = arith.constant 3 : index
    %c0_56 = arith.constant 0 : index
    %98 = vector.load %arg11[%c0_55, %c3, %c0_56] : memref<1x8x256xf32, #tpu.memory_space<vmem>>, vector<1x1x256xf32>
    %99 = vector.shape_cast %98 : vector<1x1x256xf32> to vector<1x256xf32>
    %cst_57 = arith.constant 0.000000e+00 : f32
    %100 = vector.broadcast %cst_57 : f32 to vector<1x256xf32>
    %101 = arith.maximumf %12, %100 : vector<1x256xf32>
    %102 = arith.mulf %12, %45 : vector<1x256xf32>
    %103 = arith.subf %101, %102 : vector<1x256xf32>
    %104 = math.absf %12 : vector<1x256xf32>
    %cst_58 = arith.constant 0.000000e+00 : f32
    %105 = vector.broadcast %cst_58 : f32 to vector<1x256xf32>
    %106 = arith.subf %105, %104 : vector<1x256xf32>
    %107 = math.exp %106 : vector<1x256xf32>
    %cst_59 = arith.constant 1.000000e+00 : f32
    %108 = vector.broadcast %cst_59 : f32 to vector<1x256xf32>
    %109 = arith.addf %108, %107 : vector<1x256xf32>
    %110 = math.log %109 : vector<1x256xf32>
    %111 = arith.addf %103, %110 : vector<1x256xf32>
    %cst_60 = arith.constant 0.000000e+00 : f32
    %112 = vector.broadcast %cst_60 : f32 to vector<1x256xf32>
    %113 = arith.select %37, %111, %112 : vector<1x256xi1>, vector<1x256xf32>
    %114 = arith.addf %99, %113 : vector<1x256xf32>
    %c0_61 = arith.constant 0 : index
    %c3_62 = arith.constant 3 : index
    %c0_63 = arith.constant 0 : index
    %115 = vector.load %arg11[%c0_61, %c3_62, %c0_63] : memref<1x8x256xf32, #tpu.memory_space<vmem>>, vector<1x1x256xf32>
    %116 = vector.shape_cast %115 : vector<1x1x256xf32> to vector<1x256xf32>
    %117 = vector.shape_cast %114 : vector<1x256xf32> to vector<1x1x256xf32>
    tpu.vector_store %arg11[%c0_61, %c3_62, %c0_63], %117 {strides = array<i32>} : memref<1x8x256xf32, #tpu.memory_space<vmem>>, vector<1x1x256xf32>,
    return
  }
  func.func @transform_0(%arg0: i32, %arg1: i32) -> (i32, i32, i32) {
    %c0_i32 = arith.constant 0 : i32
    %c0_i32_0 = arith.constant 0 : i32
    return %arg0, %c0_i32, %arg1 : i32, i32, i32
  }
  func.func @transform_1(%arg0: i32, %arg1: i32) -> (i32, i32) {
    %c0_i32 = arith.constant 0 : i32
    %c0_i32_0 = arith.constant 0 : i32
    %c0_i32_1 = arith.constant 0 : i32
    return %c0_i32, %c0_i32_0 : i32, i32
  }
  func.func @transform_2(%arg0: i32, %arg1: i32) -> (i32, i32) {
    %c0_i32 = arith.constant 0 : i32
    %c0_i32_0 = arith.constant 0 : i32
    %c0_i32_1 = arith.constant 0 : i32
    return %c0_i32, %c0_i32_0 : i32, i32
  }
  func.func @transform_3(%arg0: i32, %arg1: i32) -> (i32, i32, i32) {
    %c0_i32 = arith.constant 0 : i32
    %c0_i32_0 = arith.constant 0 : i32
    return %arg0, %c0_i32, %arg1 : i32, i32, i32
  }
  func.func @transform_4(%arg0: i32, %arg1: i32) -> (i32, i32, i32) {
    %c0_i32 = arith.constant 0 : i32
    %c0_i32_0 = arith.constant 0 : i32
    return %arg0, %c0_i32, %arg1 : i32, i32, i32
  }
  func.func @transform_5(%arg0: i32, %arg1: i32) -> (i32, i32, i32) {
    %c0_i32 = arith.constant 0 : i32
    %c0_i32_0 = arith.constant 0 : i32
    return %arg0, %c0_i32, %arg1 : i32, i32, i32
  }
  func.func @transform_6(%arg0: i32, %arg1: i32) -> (i32, i32, i32) {
    %c0_i32 = arith.constant 0 : i32
    %c0_i32_0 = arith.constant 0 : i32
    return %arg0, %c0_i32, %arg1 : i32, i32, i32
  }
  func.func @transform_7(%arg0: i32, %arg1: i32) -> (i32, i32, i32) {
    %c0_i32 = arith.constant 0 : i32
    %c0_i32_0 = arith.constant 0 : i32
    return %arg0, %c0_i32, %arg1 : i32, i32, i32
  }
  func.func @transform_8(%arg0: i32, %arg1: i32) -> (i32, i32, i32) {
    %c0_i32 = arith.constant 0 : i32
    %c0_i32_0 = arith.constant 0 : i32
    return %arg0, %c0_i32, %arg1 : i32, i32, i32
  }
  func.func @transform_9(%arg0: i32, %arg1: i32) -> (i32, i32, i32) {
    %c0_i32 = arith.constant 0 : i32
    %c0_i32_0 = arith.constant 0 : i32
    %c0_i32_1 = arith.constant 0 : i32
    return %arg0, %c0_i32, %c0_i32_0 : i32, i32, i32
  }
}

</mosaic_0001>

<llo_original>
// kernel: tpu_custom_call.1
$region0: #{tpu_custom_call.1}
  #allocation0 [shape = 'u32[]', space=smem, size = 0x4, offset = 0x4, fixed_abs, tag = 'smem constant byte address 0x4 - core index']
  #allocation1 [shape = 'u32[144,128]{1,0:T(1,128)}', space=vmem, size = 0x12000, scoped, tag = 'internal scratch']
  %s0 = inlined_call_operand.hbm [shape: f32[2,4,256], index: 0, kind: input, shape index: {}]
  %s1 = inlined_call_operand.vmem [shape: f32[10,4], index: 1, kind: input, shape index: {}]
  %s2 = inlined_call_operand.vmem [shape: f32[10,1], index: 2, kind: input, shape index: {}]
  %s3 = inlined_call_operand.vmem [shape: f32[2,8,256], index: 3, kind: input, shape index: {}]
  %s4 = inlined_call_operand.vmem [shape: f32[2,1,256], index: 4, kind: input, shape index: {}]
  %s5 = inlined_call_operand.vmem [shape: f32[2,1,256], index: 5, kind: input, shape index: {}]
  %s6 = inlined_call_operand.hbm [shape: f32[2,8,256], index: 6, kind: output, shape index: {0}]
  %s7 = inlined_call_operand.hbm [shape: f32[2,1,256], index: 7, kind: output, shape index: {1}]
  %s8 = inlined_call_operand.hbm [shape: f32[2,1,256], index: 8, kind: output, shape index: {2}]
  %s9 = inlined_call_operand.hbm [shape: f32[2,8,256], index: 9, kind: output, shape index: {3}]
  %10 = xla_tuple %s6, %s7, %s8, %s9
  %s11 = sld [smem:[#allocation0]]
  $region89: #{tpu_custom_call.1} parent=0
    _
  %s13 = ssub.s32 1, %s11
  %s14 = scalar_select 0, %s13, %s11
  $region1: #{tpu_custom_call.1} parent=0
    #allocation2 [shape = 'u8[8192]{0}', space=vmem, size = 0x2000, scoped, tag = 'input window, operand 0']
    #allocation3 [shape = 's32[2]{0}', space=sflag, size = 0x8, scoped, tag = 'scoped memory for tpu_custom_call.1']
    #allocation4 [shape = 's32[2]{0}', space=sflag, size = 0x8, scoped, tag = 'scoped memory for tpu_custom_call.1']
    #allocation5 [shape = 'u8[16384]{0}', space=vmem, size = 0x4000, scoped, tag = 'output window, operand 0']
    #allocation6 [shape = 'u8[2048]{0}', space=vmem, size = 0x800, scoped, tag = 'output window, operand 1']
    #allocation7 [shape = 's32[2]{0}', space=sflag, size = 0x8, scoped, tag = 'scoped memory for tpu_custom_call.1']
    #allocation8 [shape = 'u8[2048]{0}', space=vmem, size = 0x800, scoped, tag = 'output window, operand 2']
    #allocation9 [shape = 'u8[16384]{0}', space=vmem, size = 0x4000, scoped, tag = 'output window, operand 3']
    #allocation10 [shape = 's32[2]{0}', space=sflag, size = 0x8, scoped, tag = 'scoped memory for tpu_custom_call.1']
    %15 = vsyncpa [#allocation3], 0
    %s16 = scalar_lea.sflag [#allocation3], 1
    %17 = vsyncpa %s16, 0
    %18 = vsyncpa [#allocation4], 0
    %s19 = scalar_lea.sflag [#allocation4], 1
    %20 = vsyncpa %s19, 0
    %21 = vsyncpa [#allocation7], 0
    %s22 = scalar_lea.sflag [#allocation7], 1
    %23 = vsyncpa %s22, 0
    %24 = vsyncpa [#allocation10], 0
    %s25 = scalar_lea.sflag [#allocation10], 1
    %26 = vsyncpa %s25, 0
    loop: start=0, step=1, limit=4
    $region2: #{tpu_custom_call.1} parent=1 // loop_pre_header
      _
    $region3: #{tpu_custom_call.1} parent=1 // loop_header
      %s28 = sphi 0, %s32
      %p29 = scmp.ge.s32.totalorder %s28, 4
      %s35 = sphi 0, %s47
      %s36 = sphi 0, %s43
      %s37 = sphi 0, %s35
      %s38 = sphi 0, %s36
      %s39 = sphi 0, %s37
      %s40 = sphi 0, %s38
      %s52 = sphi 0, %s54
      %s55 = sphi 0, %s52
      %s56 = sphi 0, %s55
      %s72 = sphi 0, %s56
      %s76 = sphi 0, %s76
      %s78 = sphi 0, %s76
      %s79 = sphi 0, %s78
      %s93 = sphi 0, %s79
      %s97 = sphi 0, %s97
      %s99 = sphi 0, %s97
      %s100 = sphi 0, %s99
      %s114 = sphi 0, %s100
      %s122 = sphi 0, %s124
      %s125 = sphi 0, %s122
      %s126 = sphi 0, %s125
      %s142 = sphi 0, %s126
      %s150 = sphi 0, %s152
      %s153 = sphi 0, %s150
      %s154 = sphi 0, %s153
      %s170 = sphi 0, %s154
      %s178 = sphi 0, %s180
      %s181 = sphi 0, %s178
      %s182 = sphi 0, %s181
      %s198 = sphi 0, %s182
      %s206 = sphi 0, %s208
      %s209 = sphi 0, %s206
      %s210 = sphi 0, %s209
      %s226 = sphi 0, %s210
      %s234 = sphi 0, %s236
      %s237 = sphi 0, %s234
      %s238 = sphi 0, %s237
      %s254 = sphi 0, %s238
      %s262 = sphi 0, %s264
      %s265 = sphi 0, %s262
      %s266 = sphi 0, %s265
      %s282 = sphi 0, %s266
      %s288 = sphi 0, %s290
      %s291 = sphi 0, %s288
      %s292 = sphi 0, %s291
      %s308 = sphi 0, %s292
    $region4: #{tpu_custom_call.1} parent=1 // loop_header_branch
      %31 = sbr.rel (%p29) target = $region8
    $region5: #{tpu_custom_call.1} parent=1 // loop_body
      %s33 = ssub.s32 %s28, 1
      %s34 = ssub.s32 %s28, 2
      %s41 = sadd.s32 1, %s36
      %p42 = scmp.ge.s32.totalorder %s41, 1
      %s43 = scalar_select %p42, 0, %s41
      %s44 = sadd.s32 1, %s35
      %s45 = scalar_select %p42, %s44, %s35
      %p46 = scmp.ge.s32.totalorder %s45, 2
      %s47 = scalar_select %p46, 0, %s45
      %s48 = ssub.s32 %s35, %s47
      %s49 = ssub.s32 %s36, %s43
      %s50 = sor.u32 %s48, %s49
      %p51 = scmp.eq.s32.totalorder %s50, 0
      %s53 = sadd.s32 %s52, 1
      %s54 = scalar_select %p51, %s52, %s53
      %p57 = pneg %p51
      %p58 = scmp.eq.s32.totalorder %s28, 1
      %p59 = por %p57, %p58
      %p60 = scmp.ne.s32.totalorder %s52, %s55
      %p61 = scmp.eq.s32.totalorder %s28, 0
      %p62 = por %p60, %p61
      %p63 = scmp.ne.s32.totalorder %s52, %s55
      %p64 = scmp.eq.s32.totalorder %s33, 1
      %p65 = por %p63, %p64
      %p66 = scmp.ne.s32.totalorder %s55, %s56
      %p67 = scmp.eq.s32.totalorder %s33, 0
      %p68 = por %p66, %p67
      %p69 = scmp.ne.s32.totalorder %s55, %s56
      %p70 = scmp.eq.s32.totalorder %s34, 1
      %p71 = por %p69, %p70
      %p73 = scmp.ne.s32.totalorder %s56, %s72
      %p74 = scmp.eq.s32.totalorder %s34, 0
      %p75 = por %p73, %p74
      %s77 = sadd.s32 %s76, 1
      %p80 = scmp.eq.s32.totalorder %s28, 1
      %p81 = scmp.ne.s32.totalorder %s76, %s78
      %p82 = scmp.eq.s32.totalorder %s28, 0
      %p83 = por %p81, %p82
      %p84 = scmp.ne.s32.totalorder %s76, %s78
      %p85 = scmp.eq.s32.totalorder %s33, 1
      %p86 = por %p84, %p85
      %p87 = scmp.ne.s32.totalorder %s78, %s79
      %p88 = scmp.eq.s32.totalorder %s33, 0
      %p89 = por %p87, %p88
      %p90 = scmp.ne.s32.totalorder %s78, %s79
      %p91 = scmp.eq.s32.totalorder %s34, 1
      %p92 = por %p90, %p91
      %p94 = scmp.ne.s32.totalorder %s79, %s93
      %p95 = scmp.eq.s32.totalorder %s34, 0
      %p96 = por %p94, %p95
      %s98 = sadd.s32 %s97, 1
      %p101 = scmp.eq.s32.totalorder %s28, 1
      %p102 = scmp.ne.s32.totalorder %s97, %s99
      %p103 = scmp.eq.s32.totalorder %s28, 0
      %p104 = por %p102, %p103
      %p105 = scmp.ne.s32.totalorder %s97, %s99
      %p106 = scmp.eq.s32.totalorder %s33, 1
      %p107 = por %p105, %p106
      %p108 = scmp.ne.s32.totalorder %s99, %s100
      %p109 = scmp.eq.s32.totalorder %s33, 0
      %p110 = por %p108, %p109
      %p111 = scmp.ne.s32.totalorder %s99, %s100
      %p112 = scmp.eq.s32.totalorder %s34, 1
      %p113 = por %p111, %p112
      %p115 = scmp.ne.s32.totalorder %s100, %s114
      %p116 = scmp.eq.s32.totalorder %s34, 0
      %p117 = por %p115, %p116
      %s118 = ssub.s32 %s35, %s47
      %s119 = ssub.s32 %s36, %s43
      %s120 = sor.u32 %s118, %s119
      %p121 = scmp.eq.s32.totalorder %s120, 0
      %s123 = sadd.s32 %s122, 1
      %s124 = scalar_select %p121, %s122, %s123
      %p127 = pneg %p121
      %p128 = scmp.eq.s32.totalorder %s28, 1
      %p129 = por %p127, %p128
      %p130 = scmp.ne.s32.totalorder %s122, %s125
      %p131 = scmp.eq.s32.totalorder %s28, 0
      %p132 = por %p130, %p131
      %p133 = scmp.ne.s32.totalorder %s122, %s125
      %p134 = scmp.eq.s32.totalorder %s33, 1
      %p135 = por %p133, %p134
      %p136 = scmp.ne.s32.totalorder %s125, %s126
      %p137 = scmp.eq.s32.totalorder %s33, 0
      %p138 = por %p136, %p137
      %p139 = scmp.ne.s32.totalorder %s125, %s126
      %p140 = scmp.eq.s32.totalorder %s34, 1
      %p141 = por %p139, %p140
      %p143 = scmp.ne.s32.totalorder %s126, %s142
      %p144 = scmp.eq.s32.totalorder %s34, 0
      %p145 = por %p143, %p144
      %s146 = ssub.s32 %s35, %s47
      %s147 = ssub.s32 %s36, %s43
      %s148 = sor.u32 %s146, %s147
      %p149 = scmp.eq.s32.totalorder %s148, 0
      %s151 = sadd.s32 %s150, 1
      %s152 = scalar_select %p149, %s150, %s151
      %p155 = pneg %p149
      %p156 = scmp.eq.s32.totalorder %s28, 1
      %p157 = por %p155, %p156
      %p158 = scmp.ne.s32.totalorder %s150, %s153
      %p159 = scmp.eq.s32.totalorder %s28, 0
      %p160 = por %p158, %p159
      %p161 = scmp.ne.s32.totalorder %s150, %s153
      %p162 = scmp.eq.s32.totalorder %s33, 1
      %p163 = por %p161, %p162
      %p164 = scmp.ne.s32.totalorder %s153, %s154
      %p165 = scmp.eq.s32.totalorder %s33, 0
      %p166 = por %p164, %p165
      %p167 = scmp.ne.s32.totalorder %s153, %s154
      %p168 = scmp.eq.s32.totalorder %s34, 1
      %p169 = por %p167, %p168
      %p171 = scmp.ne.s32.totalorder %s154, %s170
      %p172 = scmp.eq.s32.totalorder %s34, 0
      %p173 = por %p171, %p172
      %s174 = ssub.s32 %s35, %s47
      %s175 = ssub.s32 %s36, %s43
      %s176 = sor.u32 %s174, %s175
      %p177 = scmp.eq.s32.totalorder %s176, 0
      %s179 = sadd.s32 %s178, 1
      %s180 = scalar_select %p177, %s178, %s179
      %p183 = pneg %p177
      %p184 = scmp.eq.s32.totalorder %s28, 1
      %p185 = por %p183, %p184
      %p186 = scmp.ne.s32.totalorder %s178, %s181
      %p187 = scmp.eq.s32.totalorder %s28, 0
      %p188 = por %p186, %p187
      %p189 = scmp.ne.s32.totalorder %s178, %s181
      %p190 = scmp.eq.s32.totalorder %s33, 1
      %p191 = por %p189, %p190
      %p192 = scmp.ne.s32.totalorder %s181, %s182
      %p193 = scmp.eq.s32.totalorder %s33, 0
      %p194 = por %p192, %p193
      %p195 = scmp.ne.s32.totalorder %s181, %s182
      %p196 = scmp.eq.s32.totalorder %s34, 1
      %p197 = por %p195, %p196
      %p199 = scmp.ne.s32.totalorder %s182, %s198
      %p200 = scmp.eq.s32.totalorder %s34, 0
      %p201 = por %p199, %p200
      %s202 = ssub.s32 %s35, %s47
      %s203 = ssub.s32 %s36, %s43
      %s204 = sor.u32 %s202, %s203
      %p205 = scmp.eq.s32.totalorder %s204, 0
      %s207 = sadd.s32 %s206, 1
      %s208 = scalar_select %p205, %s206, %s207
      %p211 = pneg %p205
      %p212 = scmp.eq.s32.totalorder %s28, 1
      %p213 = por %p211, %p212
      %p214 = scmp.ne.s32.totalorder %s206, %s209
      %p215 = scmp.eq.s32.totalorder %s28, 0
      %p216 = por %p214, %p215
      %p217 = scmp.ne.s32.totalorder %s206, %s209
      %p218 = scmp.eq.s32.totalorder %s33, 1
      %p219 = por %p217, %p218
      %p220 = scmp.ne.s32.totalorder %s209, %s210
      %p221 = scmp.eq.s32.totalorder %s33, 0
      %p222 = por %p220, %p221
      %p223 = scmp.ne.s32.totalorder %s209, %s210
      %p224 = scmp.eq.s32.totalorder %s34, 1
      %p225 = por %p223, %p224
      %p227 = scmp.ne.s32.totalorder %s210, %s226
      %p228 = scmp.eq.s32.totalorder %s34, 0
      %p229 = por %p227, %p228
      %s230 = ssub.s32 %s35, %s47
      %s231 = ssub.s32 %s36, %s43
      %s232 = sor.u32 %s230, %s231
      %p233 = scmp.eq.s32.totalorder %s232, 0
      %s235 = sadd.s32 %s234, 1
      %s236 = scalar_select %p233, %s234, %s235
      %p239 = pneg %p233
      %p240 = scmp.eq.s32.totalorder %s28, 1
      %p241 = por %p239, %p240
      %p242 = scmp.ne.s32.totalorder %s234, %s237
      %p243 = scmp.eq.s32.totalorder %s28, 0
      %p244 = por %p242, %p243
      %p245 = scmp.ne.s32.totalorder %s234, %s237
      %p246 = scmp.eq.s32.totalorder %s33, 1
      %p247 = por %p245, %p246
      %p248 = scmp.ne.s32.totalorder %s237, %s238
      %p249 = scmp.eq.s32.totalorder %s33, 0
      %p250 = por %p248, %p249
      %p251 = scmp.ne.s32.totalorder %s237, %s238
      %p252 = scmp.eq.s32.totalorder %s34, 1
      %p253 = por %p251, %p252
      %p255 = scmp.ne.s32.totalorder %s238, %s254
      %p256 = scmp.eq.s32.totalorder %s34, 0
      %p257 = por %p255, %p256
      %s258 = ssub.s32 %s35, %s47
      %s259 = ssub.s32 %s36, %s43
      %s260 = sor.u32 %s258, %s259
      %p261 = scmp.eq.s32.totalorder %s260, 0
      %s263 = sadd.s32 %s262, 1
      %s264 = scalar_select %p261, %s262, %s263
      %p267 = pneg %p261
      %p268 = scmp.eq.s32.totalorder %s28, 1
      %p269 = por %p267, %p268
      %p270 = scmp.ne.s32.totalorder %s262, %s265
      %p271 = scmp.eq.s32.totalorder %s28, 0
      %p272 = por %p270, %p271
      %p273 = scmp.ne.s32.totalorder %s262, %s265
      %p274 = scmp.eq.s32.totalorder %s33, 1
      %p275 = por %p273, %p274
      %p276 = scmp.ne.s32.totalorder %s265, %s266
      %p277 = scmp.eq.s32.totalorder %s33, 0
      %p278 = por %p276, %p277
      %p279 = scmp.ne.s32.totalorder %s265, %s266
      %p280 = scmp.eq.s32.totalorder %s34, 1
      %p281 = por %p279, %p280
      %p283 = scmp.ne.s32.totalorder %s266, %s282
      %p284 = scmp.eq.s32.totalorder %s34, 0
      %p285 = por %p283, %p284
      %s286 = ssub.s32 %s35, %s47
      %p287 = scmp.eq.s32.totalorder %s286, 0
      %s289 = sadd.s32 %s288, 1
      %s290 = scalar_select %p287, %s288, %s289
      %p293 = pneg %p287
      %p294 = scmp.eq.s32.totalorder %s28, 1
      %p295 = por %p293, %p294
      %p296 = scmp.ne.s32.totalorder %s288, %s291
      %p297 = scmp.eq.s32.totalorder %s28, 0
      %p298 = por %p296, %p297
      %p299 = scmp.ne.s32.totalorder %s288, %s291
      %p300 = scmp.eq.s32.totalorder %s33, 1
      %p301 = por %p299, %p300
      %p302 = scmp.ne.s32.totalorder %s291, %s292
      %p303 = scmp.eq.s32.totalorder %s33, 0
      %p304 = por %p302, %p303
      %p305 = scmp.ne.s32.totalorder %s291, %s292
      %p306 = scmp.eq.s32.totalorder %s34, 1
      %p307 = por %p305, %p306
      %p309 = scmp.ne.s32.totalorder %s292, %s308
      %p310 = scmp.eq.s32.totalorder %s34, 0
      %p311 = por %p309, %p310
      %p312 = scmp.le.s32.totalorder 1, %s28
      %p313 = scmp.lt.s32.totalorder %s28, 3
      %p314 = pnand %p312, %p313
      %p315 = pneg %p314
      // Predicated region
      $region9: #{tpu_custom_call.1} parent=5 // pred_check
        _
      $region10: #{tpu_custom_call.1} parent=5 // pred_check_branch
        %317 = sbr.rel (%p314) target = $region12
      $region11: #{tpu_custom_call.1} parent=5 // pred_region
        %s318 = ssub.s32 %s28, 1
        // Predicated region
        $region13: #{tpu_custom_call.1} parent=11 // pred_check
          %p319 = pneg %p89
        $region14: #{tpu_custom_call.1} parent=11 // pred_check_branch
          %321 = sbr.rel (%p319) target = $region16
        $region15: #{tpu_custom_call.1} parent=11 // pred_region
          _
        $region16: #{tpu_custom_call.1} parent=11 // pred_fallthru
          _
        // Predicated region
        $region17: #{tpu_custom_call.1} parent=11 // pred_check
          %p322 = pneg %p110
        $region18: #{tpu_custom_call.1} parent=11 // pred_check_branch
          %324 = sbr.rel (%p322) target = $region20
        $region19: #{tpu_custom_call.1} parent=11 // pred_region
          _
        $region20: #{tpu_custom_call.1} parent=11 // pred_fallthru
          _
      $region12: #{tpu_custom_call.1} parent=5 // pred_fallthru
        _
      %p325 = scmp.lt.s32.totalorder %s28, 2
      // Predicated region
      $region21: #{tpu_custom_call.1} parent=5 // pred_check
        %p326 = pneg %p325
      $region22: #{tpu_custom_call.1} parent=5 // pred_check_branch
        %328 = sbr.rel (%p326) target = $region24
      $region23: #{tpu_custom_call.1} parent=5 // pred_region
        // Predicated region
        $region25: #{tpu_custom_call.1} parent=23 // pred_check
          %p329 = pneg %p62
        $region26: #{tpu_custom_call.1} parent=23 // pred_check_branch
          %331 = sbr.rel (%p329) target = $region28
        $region27: #{tpu_custom_call.1} parent=23 // pred_region
          %s332 = sand.u32 %s52, 1
          %s333 = scalar_lea.sflag [#allocation3], %s332
          %s334 = sand.u32 %s52, 1
          %s335 = smul.addr %s334, 8
          %s336 = scalar_lea.vmem [#allocation2], %s335
          %s337 = smul.u32 2, %s36
          %s339 = ssub.s32 128, 128
          %340 = vsyncadd %s333, %s339
          %s341 = smul.addr %s35, 2
          %s342 = sadd.s32 %s337, %s341
          %s343 = smul.addr %s342, 64
          %s344 = scalar_lea.hbm %s0, %s343
          %s346 = sshll.u32 %s336, 4
          %s347 = int_to_ptr.vmem [resolvable:$true] %s346
          %349 = dma.hbm_to_vmem [thread:$0]  %s344, 128, %s347, %s333
        $region28: #{tpu_custom_call.1} parent=23 // pred_fallthru
          _
        // Predicated region
        $region29: #{tpu_custom_call.1} parent=23 // pred_check
          %p350 = pneg %p132
        $region30: #{tpu_custom_call.1} parent=23 // pred_check_branch
          %352 = sbr.rel (%p350) target = $region32
        $region31: #{tpu_custom_call.1} parent=23 // pred_region
          %s353 = smul.u32 2, %s36
          %p354 = scmp.lt.s32.totalorder %s35, 1
          %s355 = scalar_select %p354, %s35, 1
          %p356 = scmp.lt.s32.totalorder %s353, 1
          %s357 = scalar_select %p356, %s353, 1
          %s358 = smul.addr %s355, 2
          %s359 = sadd.s32 %s357, %s358
          %s360 = smul.addr %s359, 8
          %s361 = scalar_lea.vmem %s3, %s360
          %s362 = smul.u32 2, %s36
        $region32: #{tpu_custom_call.1} parent=23 // pred_fallthru
          _
        // Predicated region
        $region33: #{tpu_custom_call.1} parent=23 // pred_check
          %p363 = pneg %p160
        $region34: #{tpu_custom_call.1} parent=23 // pred_check_branch
          %365 = sbr.rel (%p363) target = $region36
        $region35: #{tpu_custom_call.1} parent=23 // pred_region
          %s366 = smul.u32 2, %s36
          %p367 = scmp.lt.s32.totalorder %s35, 1
          %s368 = scalar_select %p367, %s35, 1
          %p369 = scmp.lt.s32.totalorder %s366, 1
          %s370 = scalar_select %p369, %s366, 1
          %s371 = smul.addr %s368, 2
          %s372 = sadd.s32 %s370, %s371
          %s373 = scalar_lea.vmem %s4, %s372
          %s374 = smul.u32 2, %s36
        $region36: #{tpu_custom_call.1} parent=23 // pred_fallthru
          _
        // Predicated region
        $region37: #{tpu_custom_call.1} parent=23 // pred_check
          %p375 = pneg %p188
        $region38: #{tpu_custom_call.1} parent=23 // pred_check_branch
          %377 = sbr.rel (%p375) target = $region40
        $region39: #{tpu_custom_call.1} parent=23 // pred_region
          %s378 = smul.u32 2, %s36
          %p379 = scmp.lt.s32.totalorder %s35, 1
          %s380 = scalar_select %p379, %s35, 1
          %p381 = scmp.lt.s32.totalorder %s378, 1
          %s382 = scalar_select %p381, %s378, 1
          %s383 = smul.addr %s380, 2
          %s384 = sadd.s32 %s382, %s383
          %s385 = scalar_lea.vmem %s5, %s384
          %s386 = smul.u32 2, %s36
        $region40: #{tpu_custom_call.1} parent=23 // pred_fallthru
          _
      $region24: #{tpu_custom_call.1} parent=5 // pred_fallthru
        _
      %p387 = scmp.le.s32.totalorder 1, %s28
      %p388 = scmp.lt.s32.totalorder %s28, 3
      %p389 = pnand %p387, %p388
      %p390 = pneg %p389
      // Predicated region
      $region41: #{tpu_custom_call.1} parent=5 // pred_check
        _
      $region42: #{tpu_custom_call.1} parent=5 // pred_check_branch
        %392 = sbr.rel (%p389) target = $region44
      $region43: #{tpu_custom_call.1} parent=5 // pred_region
        %s393 = ssub.s32 %s28, 1
        %s394 = sand.u32 %s55, 1
        %s395 = scalar_lea.sflag [#allocation3], %s394
        %s396 = sand.u32 %s55, 1
        %s397 = smul.addr %s396, 8
        %s398 = scalar_lea.vmem [#allocation2], %s397
        // Predicated region
        $region45: #{tpu_custom_call.1} parent=43 // pred_check
          %p399 = pneg %p68
        $region46: #{tpu_custom_call.1} parent=43 // pred_check_branch
          %401 = sbr.rel (%p399) target = $region48
        $region47: #{tpu_custom_call.1} parent=43 // pred_region
          %402 = dma.done %s395, 128
        $region48: #{tpu_custom_call.1} parent=43 // pred_fallthru
          _
        %s403 = sand.u32 %s55, 1
        %s404 = scalar_lea.sflag [#allocation3], %s403
        %s405 = sand.u32 %s55, 1
        %s406 = smul.addr %s405, 8
        %s407 = scalar_lea.vmem [#allocation2], %s406
        %p408 = pneg %p68
        %p409 = pneg %p65
        %p410 = pneg %p89
        %p411 = pneg %p86
        %p412 = pneg %p110
        %p413 = pneg %p107
        %s414 = smul.u32 2, %s38
        %p415 = scmp.lt.s32.totalorder %s37, 1
        %s416 = scalar_select %p415, %s37, 1
        %p417 = scmp.lt.s32.totalorder %s414, 1
        %s418 = scalar_select %p417, %s414, 1
        %s419 = smul.addr %s416, 2
        %s420 = sadd.s32 %s418, %s419
        %s421 = smul.addr %s420, 8
        %s422 = scalar_lea.vmem %s3, %s421
        %p423 = pneg %p138
        %p424 = pneg %p135
        %s425 = smul.u32 2, %s38
        %p426 = scmp.lt.s32.totalorder %s37, 1
        %s427 = scalar_select %p426, %s37, 1
        %p428 = scmp.lt.s32.totalorder %s425, 1
        %s429 = scalar_select %p428, %s425, 1
        %s430 = smul.addr %s427, 2
        %s431 = sadd.s32 %s429, %s430
        %s432 = scalar_lea.vmem %s4, %s431
        %p433 = pneg %p166
        %p434 = pneg %p163
        %s435 = smul.u32 2, %s38
        %p436 = scmp.lt.s32.totalorder %s37, 1
        %s437 = scalar_select %p436, %s37, 1
        %p438 = scmp.lt.s32.totalorder %s435, 1
        %s439 = scalar_select %p438, %s435, 1
        %s440 = smul.addr %s437, 2
        %s441 = sadd.s32 %s439, %s440
        %s442 = scalar_lea.vmem %s5, %s441
        %p443 = pneg %p194
        %p444 = pneg %p191
        %p445 = pneg %p222
        %p446 = pneg %p219
        %s447 = sand.u32 %s209, 1
        %s448 = scalar_lea.sflag [#allocation4], %s447
        %s449 = sand.u32 %s209, 1
        %s450 = smul.addr %s449, 16
        %s451 = scalar_lea.vmem [#allocation5], %s450
        %p452 = pneg %p250
        %p453 = pneg %p247
        %s454 = sand.u32 %s33, 1
        %s455 = scalar_lea.sflag [#allocation7], %s454
        %s456 = sand.u32 %s237, 1
        %s457 = smul.addr %s456, 2
        %s458 = scalar_lea.vmem [#allocation6], %s457
        %p459 = pneg %p278
        %p460 = pneg %p275
        %s461 = sand.u32 %s33, 1
        %s462 = scalar_lea.sflag [#allocation7], %s461
        %s463 = sand.u32 %s265, 1
        %s464 = smul.addr %s463, 2
        %s465 = scalar_lea.vmem [#allocation8], %s464
        %p466 = pneg %p304
        %p467 = pneg %p301
        %s468 = sand.u32 %s291, 1
        %s469 = scalar_lea.sflag [#allocation10], %s468
        %s470 = sand.u32 %s291, 1
        %s471 = smul.addr %s470, 16
        %s472 = scalar_lea.vmem [#allocation9], %s471
        %s473 = smul.u32 2, %s38
        %s474 = smul.u32 2, %s38
        %p475 = scmp.lt.s32.totalorder %s37, 1
        %s476 = scalar_select %p475, %s37, 1
        %p477 = scmp.lt.s32.totalorder %s474, 1
        %s478 = scalar_select %p477, %s474, 1
        %s479 = smul.addr %s476, 2
        %s480 = sadd.s32 %s478, %s479
        %s481 = smul.addr %s480, 8
        %s482 = scalar_lea.vmem %s3, %s481
        %s483 = smul.u32 2, %s38
        %s484 = smul.u32 2, %s38
        %p485 = scmp.lt.s32.totalorder %s37, 1
        %s486 = scalar_select %p485, %s37, 1
        %p487 = scmp.lt.s32.totalorder %s484, 1
        %s488 = scalar_select %p487, %s484, 1
        %s489 = smul.addr %s486, 2
        %s490 = sadd.s32 %s488, %s489
        %s491 = scalar_lea.vmem %s4, %s490
        %s492 = smul.u32 2, %s38
        %s493 = smul.u32 2, %s38
        %p494 = scmp.lt.s32.totalorder %s37, 1
        %s495 = scalar_select %p494, %s37, 1
        %p496 = scmp.lt.s32.totalorder %s493, 1
        %s497 = scalar_select %p496, %s493, 1
        %s498 = smul.addr %s495, 2
        %s499 = sadd.s32 %s497, %s498
        %s500 = scalar_lea.vmem %s5, %s499
        %s501 = smul.u32 2, %s38
        %s502 = smul.u32 2, %s38
        %s503 = smul.u32 2, %s38
        %s504 = smul.u32 2, %s38
        %p505 = scmp.eq.s32.totalorder %s38, 0
        // Predicated region
        $region49: #{tpu_custom_call.1} parent=43 // pred_check
          %p506 = pneg %p505
        $region50: #{tpu_custom_call.1} parent=43 // pred_check_branch
          %508 = sbr.rel (%p506) target = $region52
        $region51: #{tpu_custom_call.1} parent=43 // pred_region
          %509 = vst [vmem:[%s472] sm:$0xff] 0.0
          %510 = vst [vmem:[%s472 + $0x8] sm:$0xff] 0.0
        $region52: #{tpu_custom_call.1} parent=43 // pred_fallthru
          _
        %v511 = vld [vmem:[%s1] sm:$0xff]
        %v512 = vld [vmem:[%s1 + $0x8] sm:$0x3]
        %v513 = vld [vmem:[%s398] sm:$0xff]
        %v514 = vld [vmem:[%s2] sm:$0xff]
        %v515 = vld [vmem:[%s2 + $0x8] sm:$0x3]
        %517 = vset.pattern.permute.xlu0 0
        %518 = vperm.xlu0 %517, %v514
        %v519 = vpop.permute.xlu0 %518
        %522 = vset.pattern.permute.xlu0 0
        %523 = vperm.xlu0 %522, %v515
        %v524 = vpop.permute.xlu0 %523
        %v527 = vcombine.high %v513, %v513
        %vm528 = vcmask 31744
        %v530 = vsel %vm528, %v511, 0
        %v533 = vsel %vm528, %v512, 0
        %vm535 = vcmask 1043456
        %v536 = vsel %vm535, %v513, 0
        %v538 = vsel %vm535, %v527, 0
        %540 = vmatprep.subr.mxu0 0.0
        %541 = vmatpush1.msra.mxu0 0.0
        %542 = vmatprep.subr.mxu0 0.0
        %543 = vmatpush1.msra.mxu0 0.0
        %544 = vmatprep.subr.mxu0 0.0
        %545 = vmatpush1.msra.mxu0 0.0
        %546 = vmatprep.subr.mxu0 0.0
        %547 = vmatpush1.msra.mxu0 0.0
        %548 = vmatprep.subr.mxu0 0.0
        %549 = vmatpush1.msra.mxu0 0.0
        %550 = vmatprep.subr.mxu0 0.0
        %551 = vmatpush1.msra.mxu0 0.0
        %552 = vmatprep.subr.mxu0 0.0
        %553 = vmatpush1.msra.mxu0 0.0
        %554 = vmatprep.subr.mxu0 0.0
        %555 = vmatpush1.msra.mxu0 0.0
        %556 = vmatprep.subr.mxu0 0.0
        %557 = vmatpush1.msra.mxu0 0.0
        %558 = vmatprep.subr.mxu0 0.0
        %559 = vmatpush1.msra.mxu0 0.0
        %560 = vmatprep.subr.mxu0 0.0
        %561 = vmatpush1.msra.mxu0 0.0
        %562 = vmatprep.subr.mxu0 0.0
        %563 = vmatpush1.msra.mxu0 0.0
        %564 = vmatprep.subr.mxu0 0.0
        %565 = vmatpush1.msra.mxu0 0.0
        %566 = vmatprep.subr.mxu0 0.0
        %567 = vmatpush1.msra.mxu0 0.0
        %568 = vmatprep.subr.mxu0 0.0
        %569 = vmatpush1.msra.mxu0 0.0
        %570 = vmatprep.subr.mxu0 %v538
        %571 = vmatpush1.msra.mxu0 %v536
        %572 = vmatprep.subr.mxu0 0.0
        %573 = vmatpush2.msra.mxu0 0.0
        %574 = vmatprep.subr.mxu0 0.0
        %575 = vmatpush2.msra.mxu0 0.0
        %576 = vmatprep.subr.mxu0 0.0
        %577 = vmatpush2.msra.mxu0 0.0
        %578 = vmatprep.subr.mxu0 0.0
        %579 = vmatpush2.msra.mxu0 0.0
        %580 = vmatprep.subr.mxu0 0.0
        %581 = vmatpush2.msra.mxu0 0.0
        %582 = vmatprep.subr.mxu0 0.0
        %583 = vmatpush2.msra.mxu0 0.0
        %584 = vmatprep.subr.mxu0 0.0
        %585 = vmatpush2.msra.mxu0 0.0
        %586 = vmatprep.subr.mxu0 0.0
        %587 = vmatpush2.msra.mxu0 0.0
        %588 = vmatprep.subr.mxu0 0.0
        %589 = vmatpush2.msra.mxu0 0.0
        %590 = vmatprep.subr.mxu0 0.0
        %591 = vmatpush2.msra.mxu0 0.0
        %592 = vmatprep.subr.mxu0 0.0
        %593 = vmatpush2.msra.mxu0 0.0
        %594 = vmatprep.subr.mxu0 0.0
        %595 = vmatpush2.msra.mxu0 0.0
        %596 = vmatprep.subr.mxu0 0.0
        %597 = vmatpush2.msra.mxu0 0.0
        %598 = vmatprep.subr.mxu0 0.0
        %599 = vmatpush2.msra.mxu0 0.0
        %600 = vmatprep.subr.mxu0 0.0
        %601 = vmatpush2.msra.mxu0 0.0
        %602 = vmatprep.subr.mxu0 0.0
        %603 = vmatpush2.msra.mxu0 0.0
        %604 = vmatprep.mubr.f32.mxu0 0.0
        %605 = vmatmul.mubr.f32.gmra.mxu0 %v530
        %v606 = vpop.f32.mrf.mxu0
        %v607 = vadd.f32 %v519, %v606
        %v608 = vpop.f32.mrf.mxu0
        %v609 = vadd.f32 %v519, %v608
        %610 = vmatprep.mubr.f32.mxu0 0.0
        %611 = vmatmul.mubr.f32.gmra.mxu0 %v533
        %v612 = vpop.f32.mrf.mxu0
        %v613 = vadd.f32 %v524, %v612
        %v614 = vpop.f32.mrf.mxu0
        %v615 = vadd.f32 %v524, %v614
        %616 = vdwg.mxu0
        %617 = vst [vmem:[%s451] sm:$0xff] %v607
        %618 = vst [vmem:[%s451 + $0x8] sm:$0xff] %v609
        %v619 = vxor.u32 %v613, 2147483648
        %v620 = vxor.u32 %v615, 2147483648
        %v621 = vmul.f32 %v619, 1.442695
        %v622 = vpow.pop %v621
        %v623 = vmul.f32 %v620, 1.442695
        %v624 = vpow.pop %v623
        %v625 = vadd.f32 %v622, 1.0
        %v626 = vadd.f32 %v624, 1.0
        %v627 = vrcp.pop %v625
        %v628 = vmul.f32 1.0, %v627
        %v629 = vrcp.pop %v626
        %v630 = vmul.f32 1.0, %v629
        %v633 = vcombine.low %v628, %v630
        %v635 = vunpack.c.l.s4 1966171168
        %v636 = vunpack.c.0.s8 %v635
        %v637 = vlaneseq
        %v638 = vshrl.u32 %v637, 7
        %v639 = vsub.s32 %v636, %v638
        %v640 = vrot.slane %v633, %v639
        %v642 = vunpack.c.l.s4 1966171168
        %v643 = vunpack.c.0.s8 %v642
        %v644 = vlaneseq
        %v645 = vshrl.u32 %v644, 7
        %v646 = vsub.s32 %v643, %v645
        %v647 = vrot.slane %v640, %v646
        %v649 = vlaneseq
        %vm650 = vcmp.ge.s32.totalorder %v649, 0
        %vm651 = vcmp.lt.s32.totalorder %v649, 256
        %vm652 = vmand %vm650, %vm651
        %653 = vst.msk [vmem:[%s458] sm:$0x3] %vm652, %v647
        %v654 = vcombine.high %v640, %v640
        %v656 = vunpack.c.l.s4 1966171168
        %v657 = vunpack.c.0.s8 %v656
        %v658 = vlaneseq
        %v659 = vshrl.u32 %v658, 7
        %v660 = vsub.s32 %v657, %v659
        %v661 = vrot.slane %v654, %v660
        %663 = vst.msk [vmem:[%s465] sm:$0x3] %vm652, %v661
        %v664 = vlaneseq
        %v665 = vand.u32 %v664, 127
        %v666 = vadd.s32 %v665, 128
        %s667 = smul.u32 %s38, 256
        %v668 = vstv %s667
        %v669 = vadd.s32 %v668, %v665
        %v670 = vadd.s32 %v668, %v666
        %vm671 = vcmp.lt.s32.totalorder %v669, 256
        %vm672 = vcmp.lt.s32.totalorder %v670, 256
        %v673 = vld [vmem:[%s491] sm:$0x3]
        %v675 = vlaneseq
        %v676 = vshrl.u32 %v675, 7
        %v677 = vsub.s32 0, %v676
        %v678 = vrot.slane %v673, %v677
        %v679 = vlaneseq
        %v680 = vshrl.u32 %v679, 7
        %v681 = vsub.s32 1, %v680
        %v682 = vrot.slane %v673, %v681
        %v685 = vsel %vm671, %v678, 0.0
        %v686 = vsel %vm672, %v682, 0.0
        %v687 = vld [vmem:[%s500] sm:$0x3]
        %v689 = vlaneseq
        %v690 = vshrl.u32 %v689, 7
        %v691 = vsub.s32 0, %v690
        %v692 = vrot.slane %v687, %v691
        %v693 = vlaneseq
        %v694 = vshrl.u32 %v693, 7
        %v695 = vsub.s32 1, %v694
        %v696 = vrot.slane %v687, %v695
        %v699 = vsel %vm671, %v692, 0.0
        %v700 = vsel %vm672, %v696, 0.0
        %v701 = vld [vmem:[%s482] sm:$0xff]
        %v702 = vld [vmem:[%s482 + $0x8] sm:$0xff]
        %v703 = vsub.f32 %v607, %v701
        %v704 = vsub.f32 %v609, %v702
        %v705 = vlaneseq
        %v706 = vshrl.u32 %v705, 7
        %v707 = vsub.s32 0, %v706
        %v708 = vrot.slane %v685, %v707
        %v709 = vlaneseq
        %v710 = vshrl.u32 %v709, 7
        %v711 = vsub.s32 0, %v710
        %v712 = vrot.slane %v686, %v711
        %v713 = vmul.f32 %v703, %v708
        %v714 = vmul.f32 %v704, %v712
        %v715 = vsel %vm671, 1, 0
        %v716 = vsel %vm672, 1, 0
        %vm717 = vcmp.eq.s32.totalorder %v715, 1
        %vm718 = vcmp.eq.s32.totalorder %v716, 1
        %v719 = vsel %vm717, %v713, 0.0
        %v720 = vsel %vm718, %v714, 0.0
        %v721 = vand.u32 2147483647, %v719
        %v722 = vand.u32 2147483647, %v720
        %vm723 = vcmp.lt.f32.partialorder %v721, 1.0
        %vm724 = vcmp.lt.f32.partialorder %v722, 1.0
        %v725 = vmul.f32 %v719, 0.5
        %v726 = vmul.f32 %v720, 0.5
        %v727 = vmul.f32 %v725, %v719
        %v728 = vmul.f32 %v726, %v720
        %v729 = vsub.f32 %v721, 0.5
        %v730 = vsub.f32 %v722, 0.5
        %v731 = vsel %vm723, %v727, %v729
        %v732 = vsel %vm724, %v728, %v730
        %v733 = vld [vmem:[%s472] ss:$8 sm:$0x3]
        %v734 = vrot.slane %v731, 4
        %v735 = vadd.f32 %v731, %v734
        %v736 = vrot.slane %v735, 2
        %v737 = vadd.f32 %v735, %v736
        %v738 = vrot.slane %v737, 1
        %v739 = vadd.f32 %v737, %v738
        %v740 = vrot.slane %v732, 4
        %v741 = vadd.f32 %v732, %v740
        %v742 = vrot.slane %v741, 2
        %v743 = vadd.f32 %v741, %v742
        %v744 = vrot.slane %v743, 1
        %v745 = vadd.f32 %v743, %v744
        %v748 = vcombine.low %v739, %v745
        %v750 = vunpack.c.l.s4 1966171168
        %v751 = vunpack.c.0.s8 %v750
        %v752 = vlaneseq
        %v753 = vshrl.u32 %v752, 7
        %v754 = vsub.s32 %v751, %v753
        %v755 = vrot.slane %v748, %v754
        %v757 = vunpack.c.l.s4 1966171168
        %v758 = vunpack.c.0.s8 %v757
        %v759 = vlaneseq
        %v760 = vshrl.u32 %v759, 7
        %v761 = vsub.s32 %v758, %v760
        %v762 = vrot.slane %v755, %v761
        %v764 = vadd.f32 %v733, %v762
        %765 = vst.msk [vmem:[%s472] ss:$8 sm:$0x3] %vm652, %v764
        %766 = vst.msk [vmem:[%s472] ss:$8 sm:$0x0] %vm652, %v764
        %s767 = scalar_lea.vmem %s472, 1 [#allocation9]
        %v768 = vld [vmem:[%s767] ss:$8 sm:$0x3]
        %v771 = vcombine.low %v685, %v686
        %v773 = vunpack.c.l.s4 1966171168
        %v774 = vunpack.c.0.s8 %v773
        %v775 = vlaneseq
        %v776 = vshrl.u32 %v775, 7
        %v777 = vsub.s32 %v774, %v776
        %v778 = vrot.slane %v771, %v777
        %v780 = vunpack.c.l.s4 1966171168
        %v781 = vunpack.c.0.s8 %v780
        %v782 = vlaneseq
        %v783 = vshrl.u32 %v782, 7
        %v784 = vsub.s32 %v781, %v783
        %v785 = vrot.slane %v778, %v784
        %v787 = vadd.f32 %v768, %v785
        %788 = vst.msk [vmem:[%s767] ss:$8 sm:$0x3] %vm652, %v787
        %789 = vst.msk [vmem:[%s767] ss:$8 sm:$0x0] %vm652, %v787
        %s790 = scalar_lea.vmem %s472, 2 [#allocation9]
        %v791 = vld [vmem:[%s790] ss:$8 sm:$0x3]
        %v792 = vmax.f32 %v613, 0.0
        %v793 = vmax.f32 %v615, 0.0
        %v794 = vmul.f32 %v613, %v685
        %v795 = vmul.f32 %v615, %v686
        %v796 = vsub.f32 %v792, %v794
        %v797 = vsub.f32 %v793, %v795
        %v798 = vand.u32 2147483647, %v613
        %v799 = vand.u32 2147483647, %v615
        %v800 = vsub.f32 0.0, %v798
        %v801 = vsub.f32 0.0, %v799
        %v802 = vmul.f32 %v800, 1.442695
        %v803 = vpow.pop %v802
        %v804 = vmul.f32 %v801, 1.442695
        %v805 = vpow.pop %v804
        %v806 = vadd.f32 %v803, 1.0
        %v807 = vadd.f32 %v805, 1.0
        %v808 = vlog2.pop %v806
        %v809 = vmul.f32 %v808, 0.6931472
        %v810 = vlog2.pop %v807
        %v811 = vmul.f32 %v810, 0.6931472
        %v812 = vadd.f32 %v796, %v809
        %v813 = vadd.f32 %v797, %v811
        %v814 = vsel %vm671, %v812, 0.0
        %v815 = vsel %vm672, %v813, 0.0
        %v818 = vcombine.low %v814, %v815
        %v820 = vunpack.c.l.s4 1966171168
        %v821 = vunpack.c.0.s8 %v820
        %v822 = vlaneseq
        %v823 = vshrl.u32 %v822, 7
        %v824 = vsub.s32 %v821, %v823
        %v825 = vrot.slane %v818, %v824
        %v827 = vunpack.c.l.s4 1966171168
        %v828 = vunpack.c.0.s8 %v827
        %v829 = vlaneseq
        %v830 = vshrl.u32 %v829, 7
        %v831 = vsub.s32 %v828, %v830
        %v832 = vrot.slane %v825, %v831
        %v834 = vadd.f32 %v791, %v832
        %835 = vst.msk [vmem:[%s790] ss:$8 sm:$0x3] %vm652, %v834
        %836 = vst.msk [vmem:[%s790] ss:$8 sm:$0x0] %vm652, %v834
        %s837 = scalar_lea.vmem %s472, 3 [#allocation9]
        %v838 = vld [vmem:[%s837] ss:$8 sm:$0x3]
        %v841 = vrot.slane %v699, 7
        %v842 = vrot.slane %v700, 7
        %v845 = vmul.f32 %v613, %v841
        %v846 = vmul.f32 %v615, %v842
        %v847 = vsub.f32 %v792, %v845
        %v848 = vsub.f32 %v793, %v846
        %v849 = vadd.f32 %v847, %v809
        %v850 = vadd.f32 %v848, %v811
        %v851 = vsel %vm671, %v849, 0.0
        %v852 = vsel %vm672, %v850, 0.0
        %v855 = vcombine.low %v851, %v852
        %v857 = vunpack.c.l.s4 1966171168
        %v858 = vunpack.c.0.s8 %v857
        %v859 = vlaneseq
        %v860 = vshrl.u32 %v859, 7
        %v861 = vsub.s32 %v858, %v860
        %v862 = vrot.slane %v855, %v861
        %v863 = vcombine.high %v862, %v862
        %v865 = vunpack.c.l.s4 1966171168
        %v866 = vunpack.c.0.s8 %v865
        %v867 = vlaneseq
        %v868 = vshrl.u32 %v867, 7
        %v869 = vsub.s32 %v866, %v868
        %v870 = vrot.slane %v863, %v869
        %v872 = vadd.f32 %v838, %v870
        %873 = vst.msk [vmem:[%s837] ss:$8 sm:$0x3] %vm652, %v872
        %874 = vst.msk [vmem:[%s837] ss:$8 sm:$0x0] %vm652, %v872
        %s875 = sand.u32 %s209, 1
        %s876 = scalar_lea.sflag [#allocation4], %s875
        %s877 = sand.u32 %s209, 1
        %s878 = smul.addr %s877, 16
        %s879 = scalar_lea.vmem [#allocation5], %s878
        %s880 = sand.u32 %s33, 1
        %s881 = scalar_lea.sflag [#allocation7], %s880
        %s882 = sand.u32 %s237, 1
        %s883 = smul.addr %s882, 2
        %s884 = scalar_lea.vmem [#allocation6], %s883
        %s885 = sand.u32 %s33, 1
        %s886 = scalar_lea.sflag [#allocation7], %s885
        %s887 = sand.u32 %s265, 1
        %s888 = smul.addr %s887, 2
        %s889 = scalar_lea.vmem [#allocation8], %s888
        %s890 = sand.u32 %s291, 1
        %s891 = scalar_lea.sflag [#allocation10], %s890
        %s892 = sand.u32 %s291, 1
        %s893 = smul.addr %s892, 16
        %s894 = scalar_lea.vmem [#allocation9], %s893
        // Predicated region
        $region53: #{tpu_custom_call.1} parent=43 // pred_check
          %p895 = pneg %p219
        $region54: #{tpu_custom_call.1} parent=43 // pred_check_branch
          %897 = sbr.rel (%p895) target = $region56
        $region55: #{tpu_custom_call.1} parent=43 // pred_region
          %s898 = smul.u32 2, %s38
          %s900 = ssub.s32 256, 256
          %901 = vsyncadd %s876, %s900
          %s902 = smul.addr %s37, 2
          %s903 = sadd.s32 %s898, %s902
          %s904 = smul.addr %s903, 128
          %s905 = scalar_lea.hbm %s6, %s904
          %s907 = sshll.u32 %s879, 4
          %s908 = int_to_ptr.vmem [resolvable:$true] %s907
          %910 = dma.vmem_to_hbm [thread:$0]  %s908, 256, %s905, %s876
        $region56: #{tpu_custom_call.1} parent=43 // pred_fallthru
          _
        // Predicated region
        $region57: #{tpu_custom_call.1} parent=43 // pred_check
          %p911 = pneg %p247
        $region58: #{tpu_custom_call.1} parent=43 // pred_check_branch
          %913 = sbr.rel (%p911) target = $region60
        $region59: #{tpu_custom_call.1} parent=43 // pred_region
          %s914 = smul.u32 2, %s38
          %s916 = ssub.s32 32, 32
          %917 = vsyncadd %s881, %s916
          %s918 = smul.addr %s37, 2
          %s919 = sadd.s32 %s914, %s918
          %s920 = smul.addr %s919, 16
          %s921 = scalar_lea.hbm %s7, %s920
          %s923 = sshll.u32 %s884, 4
          %s924 = int_to_ptr.vmem [resolvable:$true] %s923
          %926 = dma.vmem_to_hbm [thread:$0]  %s924, 32, %s921, %s881
        $region60: #{tpu_custom_call.1} parent=43 // pred_fallthru
          _
        // Predicated region
        $region61: #{tpu_custom_call.1} parent=43 // pred_check
          %p927 = pneg %p275
        $region62: #{tpu_custom_call.1} parent=43 // pred_check_branch
          %929 = sbr.rel (%p927) target = $region64
        $region63: #{tpu_custom_call.1} parent=43 // pred_region
          %s930 = smul.u32 2, %s38
          %s932 = ssub.s32 32, 32
          %933 = vsyncadd %s886, %s932
          %s934 = smul.addr %s37, 2
          %s935 = sadd.s32 %s930, %s934
          %s936 = smul.addr %s935, 16
          %s937 = scalar_lea.hbm %s8, %s936
          %s939 = sshll.u32 %s889, 4
          %s940 = int_to_ptr.vmem [resolvable:$true] %s939
          %942 = dma.vmem_to_hbm [thread:$0]  %s940, 32, %s937, %s886
        $region64: #{tpu_custom_call.1} parent=43 // pred_fallthru
          _
        // Predicated region
        $region65: #{tpu_custom_call.1} parent=43 // pred_check
          %p943 = pneg %p301
        $region66: #{tpu_custom_call.1} parent=43 // pred_check_branch
          %945 = sbr.rel (%p943) target = $region68
        $region67: #{tpu_custom_call.1} parent=43 // pred_region
          %s947 = ssub.s32 256, 256
          %948 = vsyncadd %s891, %s947
          %s949 = smul.addr %s37, 2
          %s950 = smul.addr %s949, 128
          %s951 = scalar_lea.hbm %s9, %s950
          %s953 = sshll.u32 %s894, 4
          %s954 = int_to_ptr.vmem [resolvable:$true] %s953
          %956 = dma.vmem_to_hbm [thread:$0]  %s954, 256, %s951, %s891
        $region68: #{tpu_custom_call.1} parent=43 // pred_fallthru
          _
      $region44: #{tpu_custom_call.1} parent=5 // pred_fallthru
        _
      %p957 = scmp.le.s32.totalorder 2, %s28
      // Predicated region
      $region69: #{tpu_custom_call.1} parent=5 // pred_check
        %p958 = pneg %p957
      $region70: #{tpu_custom_call.1} parent=5 // pred_check_branch
        %960 = sbr.rel (%p958) target = $region72
      $region71: #{tpu_custom_call.1} parent=5 // pred_region
        %s961 = ssub.s32 %s28, 2
        // Predicated region
        $region73: #{tpu_custom_call.1} parent=71 // pred_check
          %p962 = pneg %p225
        $region74: #{tpu_custom_call.1} parent=71 // pred_check_branch
          %964 = sbr.rel (%p962) target = $region76
        $region75: #{tpu_custom_call.1} parent=71 // pred_region
          %s965 = sand.u32 %s210, 1
          %s966 = scalar_lea.sflag [#allocation4], %s965
          %s967 = sand.u32 %s210, 1
          %s968 = smul.addr %s967, 16
          %s969 = scalar_lea.vmem [#allocation5], %s968
          %970 = dma.done %s966, 256
        $region76: #{tpu_custom_call.1} parent=71 // pred_fallthru
          _
        // Predicated region
        $region77: #{tpu_custom_call.1} parent=71 // pred_check
          %p971 = pneg %p253
        $region78: #{tpu_custom_call.1} parent=71 // pred_check_branch
          %973 = sbr.rel (%p971) target = $region80
        $region79: #{tpu_custom_call.1} parent=71 // pred_region
          %s974 = sand.u32 %s34, 1
          %s975 = scalar_lea.sflag [#allocation7], %s974
          %s976 = sand.u32 %s238, 1
          %s977 = smul.addr %s976, 2
          %s978 = scalar_lea.vmem [#allocation6], %s977
          %979 = dma.done %s975, 32
        $region80: #{tpu_custom_call.1} parent=71 // pred_fallthru
          _
        // Predicated region
        $region81: #{tpu_custom_call.1} parent=71 // pred_check
          %p980 = pneg %p281
        $region82: #{tpu_custom_call.1} parent=71 // pred_check_branch
          %982 = sbr.rel (%p980) target = $region84
        $region83: #{tpu_custom_call.1} parent=71 // pred_region
          %s983 = sand.u32 %s34, 1
          %s984 = scalar_lea.sflag [#allocation7], %s983
          %s985 = sand.u32 %s266, 1
          %s986 = smul.addr %s985, 2
          %s987 = scalar_lea.vmem [#allocation8], %s986
          %988 = dma.done %s984, 32
        $region84: #{tpu_custom_call.1} parent=71 // pred_fallthru
          _
        // Predicated region
        $region85: #{tpu_custom_call.1} parent=71 // pred_check
          %p989 = pneg %p307
        $region86: #{tpu_custom_call.1} parent=71 // pred_check_branch
          %991 = sbr.rel (%p989) target = $region88
        $region87: #{tpu_custom_call.1} parent=71 // pred_region
          %s992 = sand.u32 %s292, 1
          %s993 = scalar_lea.sflag [#allocation10], %s992
          %s994 = sand.u32 %s292, 1
          %s995 = smul.addr %s994, 16
          %s996 = scalar_lea.vmem [#allocation9], %s995
          %997 = dma.done %s993, 256
        $region88: #{tpu_custom_call.1} parent=71 // pred_fallthru
          _
      $region72: #{tpu_custom_call.1} parent=5 // pred_fallthru
        _
    $region6: #{tpu_custom_call.1} parent=1 // loop_footer
      %s32 = sadd.s32 1, %s28
    $region7: #{tpu_custom_call.1} parent=1 // loop_footer_branch
      %27 = sbr.rel target = $region3
    $region8: #{tpu_custom_call.1} parent=1 // loop_exit
      _
    %998 = vsyncpa [#allocation3], 1
    %s999 = scalar_lea.sflag [#allocation3], 1
    %1000 = vsyncpa %s999, 1
    %1001 = vsyncpa [#allocation4], 1
    %s1002 = scalar_lea.sflag [#allocation4], 1
    %1003 = vsyncpa %s1002, 1
    %1004 = vsyncpa [#allocation7], 1
    %s1005 = scalar_lea.sflag [#allocation7], 1
    %1006 = vsyncpa %s1005, 1
    %1007 = vsyncpa [#allocation10], 1
    %s1008 = scalar_lea.sflag [#allocation10], 1
    %1009 = vsyncpa %s1008, 1

</llo_original>
